<compile_context>
chip_gen: v7x
topology: tpu7x:2x2x1
jax: 0.10.0
libtpu: 0.0.40
codegen_flags: <defaults>
</compile_context>

<pallas_src>
import functools

import jax
import jax.numpy as jnp
from jax.experimental import pallas as pl
from jax.experimental.pallas import tpu as pltpu


LEAKY_SLOPE = 0.2


def _round_up(x, m):
    return (x + m - 1) // m * m


def _choose_k_tile(d_pad, cap):
    """Largest multiple of 128 <= cap that evenly divides d_pad (d_pad % 128 == 0)."""
    cap = max(128, (min(cap, d_pad) // 128) * 128)
    for cand in range(cap, 127, -128):
        if d_pad % cand == 0:
            return cand
    return 128


def _disc_mean_kernel(*refs, n_inputs, k_tile, true_batch, b_tile, inv_batch,
                      mask_rows, w1_resident):
    """Partial batch-means of the synthetic discriminator (pre output-bias b2).

    refs = (x_0..x_{n-1}, w1, b1w2, out, acc_0..acc_{n-1})
      x_n   : [B_TILE, K_TILE] f32 tile of input n
      w1    : [D_PAD, H_PAD] bf16 (VMEM resident) or [K_TILE, H_PAD] (streamed)
      b1w2  : [2, H_PAD] f32  (row 0 = b1, row 1 = w2)
      out   : [1, n_inputs] f32 SMEM -- partial mean for this batch tile
      acc_n : [B_TILE, H_PAD] f32 pre-activation accumulator (K reduction)
    """
    x_refs = refs[:n_inputs]
    w1_ref = refs[n_inputs]
    b1w2_ref = refs[n_inputs + 1]
    out_ref = refs[n_inputs + 2]
    acc_refs = refs[n_inputs + 3:]

    b = pl.program_id(0)
    k = pl.program_id(1)
    nk = pl.num_programs(1)

    # Reset the pre-activation accumulators at the start of each K reduction.
    @pl.when(k == 0)
    def _():
        for n in range(n_inputs):
            acc_refs[n][...] = jnp.zeros_like(acc_refs[n])

    # Select the K tile of w1 (resident w1 is sliced in VMEM; streamed w1 is
    # already the tile).  x arrives as f32 and is cast to bf16 for the MXU.
    if w1_resident:
        k_off = pl.multiple_of(k * k_tile, k_tile)
        w1_tile = w1_ref[pl.ds(k_off, k_tile), :]
    else:
        w1_tile = w1_ref[...]

    for n in range(n_inputs):
        acc_refs[n][...] += jnp.dot(x_refs[n][...].astype(jnp.bfloat16), w1_tile,
                                    preferred_element_type=jnp.float32)

    # After the full K reduction: bias, LeakyReLU, fold layer 2 as a reduction,
    # and emit this batch tile's partial mean to SMEM.
    @pl.when(k == nk - 1)
    def _():
        b1 = b1w2_ref[0:1, :]
        w2 = b1w2_ref[1:2, :]
        for n in range(n_inputs):
            h = acc_refs[n][...] + b1                    # [B_TILE, H_PAD]
            h = jnp.where(h > 0, h, LEAKY_SLOPE * h)     # LeakyReLU(0.2)
            contrib = h * w2
            if mask_rows:                                # mask padded batch rows
                row = jax.lax.broadcasted_iota(jnp.int32, contrib.shape, 0) + b * b_tile
                contrib = jnp.where(row < true_batch, contrib, 0.0)
            out_ref[0, n] = jnp.sum(contrib) * inv_batch


def _disc_means(xs, w1, b1, w2):
    """mean_over_batch(layer2_pre_bias(D(x))) for each x in xs.

    xs : tuple of [B, D] f32 arrays (identical shapes), w1 : [D, H],
    b1 : [1, H], w2 : [H, 1].  Returns [len(xs)] f32 (b2 added by the caller).
    """
    n_inputs = len(xs)
    B, D = xs[0].shape
    _, H = w1.shape

    H_PAD = _round_up(H, 128)                     # lane-dense hidden dim
    D_PAD = _round_up(D, 128)                     # pad D only to 128, not to K_TILE

    # Batch tiling: full-extent (no pad) when B fits in one MXU-friendly tile.
    B_TILE = B if B <= 256 else 256
    B_PAD = _round_up(B, B_TILE)
    mask_rows = B_PAD != B

    # K tile: as large as a VMEM budget allows, and an exact divisor of D_PAD.
    x_tile_budget = 24 << 20                      # double-buffered f32 x tiles
    k_cap = max(128, x_tile_budget // (2 * n_inputs * B_TILE * 4))
    K_TILE = _choose_k_tile(D_PAD, min(4096, k_cap))

    # Keep w1 fully VMEM-resident unless it is large; then stream per-k tiles.
    w1_resident = (D_PAD * H_PAD * 2) <= (16 << 20)

    # Inputs: x stays f32 (cast to bf16 in-kernel); pad only if shapes require it.
    def prep_x(x2d):
        if B_PAD == B and D_PAD == D:
            return x2d
        return jnp.pad(x2d, ((0, B_PAD - B), (0, D_PAD - D)))
    xs_p = tuple(prep_x(x) for x in xs)

    # Small weight tensors (one-time pad/convert; padded lanes have b1=w2=0).
    w1_p = jnp.zeros((D_PAD, H_PAD), jnp.bfloat16).at[:D, :H].set(w1.astype(jnp.bfloat16))
    b1w2 = jnp.zeros((2, H_PAD), jnp.float32)
    b1w2 = b1w2.at[0, :H].set(b1.reshape(H)).at[1, :H].set(w2.reshape(H))

    nb = B_PAD // B_TILE
    nk = D_PAD // K_TILE
    grid = (nb, nk)

    if w1_resident:
        w1_spec = pl.BlockSpec((D_PAD, H_PAD), lambda b, k: (0, 0))
        w1_bytes = 2 * D_PAD * H_PAD * 2
    else:
        w1_spec = pl.BlockSpec((K_TILE, H_PAD), lambda b, k: (k, 0))
        w1_bytes = 2 * K_TILE * H_PAD * 2

    x_specs = [pl.BlockSpec((B_TILE, K_TILE), lambda b, k: (b, k)) for _ in range(n_inputs)]

    # Explicit VMEM limit (v5e scoped default is 16 MiB; v7x physical is 64 MiB).
    vmem_est = (2 * n_inputs * B_TILE * K_TILE * 4      # double-buffered x tiles
                + w1_bytes                               # w1 (counted 2x above)
                + 2 * 2 * H_PAD * 4                      # b1w2
                + n_inputs * B_TILE * H_PAD * 4)         # accumulators
    vmem_limit = int(min(max(vmem_est + (8 << 20), 32 << 20), 64 << 20))

    kernel = functools.partial(
        _disc_mean_kernel,
        n_inputs=n_inputs, k_tile=K_TILE, true_batch=B, b_tile=B_TILE,
        inv_batch=1.0 / float(B), mask_rows=mask_rows, w1_resident=w1_resident)

    partials = pl.pallas_call(
        kernel,
        out_shape=jax.ShapeDtypeStruct((nb, n_inputs), jnp.float32),
        grid_spec=pltpu.PrefetchScalarGridSpec(
            num_scalar_prefetch=0,
            grid=grid,
            in_specs=x_specs + [w1_spec,
                                pl.BlockSpec((2, H_PAD), lambda b, k: (0, 0))],
            out_specs=pl.BlockSpec((1, n_inputs), lambda b, k: (b, 0),
                                   memory_space=pltpu.MemorySpace.SMEM),
            scratch_shapes=[pltpu.VMEM((B_TILE, H_PAD), jnp.float32)
                            for _ in range(n_inputs)],
        ),
        compiler_params=pltpu.CompilerParams(
            dimension_semantics=("parallel", "arbitrary"),
            vmem_limit_bytes=vmem_limit),
        cost_estimate=pl.CostEstimate(
            flops=2 * n_inputs * B_PAD * D_PAD * H_PAD,
            transcendentals=0,
            bytes_accessed=(n_inputs * B_PAD * D_PAD * 4
                            + (D_PAD * H_PAD * 2 if w1_resident
                               else nb * D_PAD * H_PAD * 2)
                            + 2 * H_PAD * 4 + nb * n_inputs * 4)),
    )(*xs_p, w1_p, b1w2)

    # Tiny final reduce over batch tiles (partials are already divided by B).
    return jnp.sum(partials, axis=0)


def _flatten_nchw(x):
    # NCHW -> [B, C*H*W], row-major (matches torch .view(B, -1)); no dtype copy.
    return x.reshape(x.shape[0], -1).astype(jnp.float32)


@functools.partial(jax.jit, static_argnames=("optimization_mode",))
def wasserstein_gan_loss(batch, output, params, weight, optimization_mode):
    """Forward pass of WassersteinGANLoss.

    `weight` is kept as a buffer (as in the PyTorch module); the reference
    forward does not apply it, so neither do we.
    """
    w1, b1, w2, b2 = params
    b2s = b2.reshape(())
    if optimization_mode == "generator":
        means = _disc_means((_flatten_nchw(output),), w1, b1, w2)          # (1,)
        return -(means[0] + b2s)
    elif optimization_mode == "discriminator":
        # Both passes (D(output), D(batch)) fused into ONE pallas_call, no stack.
        means = _disc_means((_flatten_nchw(output), _flatten_nchw(batch)),
                            w1, b1, w2)                                    # (2,)
        # (mean_out + b2) - (mean_batch + b2) == mean_out - mean_batch
        return means[0] - means[1]
    else:
        raise ValueError(f"unknown optimization mode: {optimization_mode}")


def init_discriminator_params(key, in_features, hidden):
    """Deterministic synthetic discriminator parameters."""
    k1, k2, k3, k4 = jax.random.split(key, 4)
    scale1 = 1.0 / jnp.sqrt(in_features)
    scale2 = 1.0 / jnp.sqrt(hidden)
    w1 = jax.random.uniform(k1, (in_features, hidden), jnp.float32, -scale1, scale1)
    b1 = jax.random.uniform(k2, (1, hidden), jnp.float32, -scale1, scale1)
    w2 = jax.random.uniform(k3, (hidden, 1), jnp.float32, -scale2, scale2)
    b2 = jax.random.uniform(k4, (1, 1), jnp.float32, -scale2, scale2)
    return (w1, b1, w2, b2)


if __name__ == "__main__":
    key = jax.random.PRNGKey(0)
    k_params, k_batch, k_output = jax.random.split(key, 3)

    B, C, Himg, Wimg = 2, 4, 16, 16        # small NCHW shapes
    HIDDEN = 32
    D = C * Himg * Wimg

    params = init_discriminator_params(k_params, D, HIDDEN)
    weight = jnp.asarray(1.0, dtype=jnp.float32)   # Loss.weight buffer (unused in fwd)

    batch = jax.random.normal(k_batch, (B, C, Himg, Wimg), jnp.float32)    # real data
    output = jax.random.normal(k_output, (B, C, Himg, Wimg), jnp.float32)  # generator output

    loss_gen = wasserstein_gan_loss(batch, output, params, weight, "generator")
    loss_disc = wasserstein_gan_loss(batch, output, params, weight, "discriminator")

    jax.block_until_ready(loss_gen)
    jax.block_until_ready(loss_disc)

    # --- Sanity checks ------------------------------------------------------
    w1, b1, w2, b2 = params

    def ref_disc_mean(x, cast_bf16):
        xf = x.reshape(x.shape[0], -1)
        w1f = w1
        if cast_bf16:   # match the kernel's in-kernel bf16 cast of x and bf16 w1
            xf = xf.astype(jnp.bfloat16).astype(jnp.float32)
            w1f = w1.astype(jnp.bfloat16).astype(jnp.float32)
        h = xf @ w1f + b1
        h = jnp.where(h > 0, h, LEAKY_SLOPE * h)
        return jnp.mean(h @ w2 + b2)

    # Tight check against a reference using the same bf16-cast operands.
    ref_gen_bf = -ref_disc_mean(output, True)
    ref_disc_bf = ref_disc_mean(output, True) - ref_disc_mean(batch, True)
    assert jnp.allclose(loss_gen, ref_gen_bf, rtol=1e-3, atol=1e-3), (loss_gen, ref_gen_bf)
    assert jnp.allclose(loss_disc, ref_disc_bf, rtol=1e-3, atol=1e-3), (loss_disc, ref_disc_bf)

    # Loose check against the pure-f32 reference (bf16 MXU operands drift slightly).
    ref_gen_f32 = -ref_disc_mean(output, False)
    ref_disc_f32 = ref_disc_mean(output, False) - ref_disc_mean(batch, False)
    assert jnp.allclose(loss_gen, ref_gen_f32, atol=2e-2), (loss_gen, ref_gen_f32)
    assert jnp.allclose(loss_disc, ref_disc_f32, atol=2e-2), (loss_disc, ref_disc_f32)

    print("KERNEL_OK")
</pallas_src>

<mosaic_0001>
module attributes {stable_mosaic.version = 11 : i64} {
  func.func @_disc_mean_kernel(%arg0: i32, %arg1: i32, %arg2: memref<2x1024xf32, #tpu.memory_space<vmem>>, %arg3: memref<1024x128xbf16, #tpu.memory_space<vmem>>, %arg4: memref<2x128xf32, #tpu.memory_space<vmem>>, %arg5: memref<1x1xf32, #tpu.memory_space<smem>>, %arg6: memref<2x128xf32, #tpu.memory_space<vmem>>) attributes {dimension_semantics = [#tpu.dimension_semantics<parallel>, #tpu.dimension_semantics<arbitrary>], iteration_bounds = array<i64: 1, 1>, scalar_prefetch = 0 : i64, scratch_operands = 1 : i64, tpu.core_type = #tpu.core_type<tc>, window_params = [{transform_indices = @transform_0, window_bounds = array<i64: 2, 1024>}, {pipeline_mode = #tpu.pipeline_mode<synchronous>, transform_indices = @transform_1, window_bounds = array<i64: 1024, 128>}, {pipeline_mode = #tpu.pipeline_mode<synchronous>, transform_indices = @transform_2, window_bounds = array<i64: 2, 128>}, {transform_indices = @transform_3, window_bounds = array<i64: 1, 1>}]} {
    %c0_i32 = arith.constant 0 : i32
    %0 = arith.cmpi eq, %arg1, %c0_i32 : i32
    %1 = arith.extui %0 : i1 to i32
    %c0_i32_0 = arith.constant 0 : i32
    %2 = arith.cmpi ne, %1, %c0_i32_0 : i32
    scf.if %2 {
      %cst_9 = arith.constant 0.000000e+00 : f32
      %16 = vector.broadcast %cst_9 : f32 to vector<2x128xf32>
      %c0_10 = arith.constant 0 : index
      %c0_11 = arith.constant 0 : index
      %17 = vector.load %arg6[%c0_10, %c0_11] : memref<2x128xf32, #tpu.memory_space<vmem>>, vector<2x128xf32>
      tpu.vector_store %arg6[%c0_10, %c0_11], %16 {strides = array<i32>} : memref<2x128xf32, #tpu.memory_space<vmem>>, vector<2x128xf32>,
    } else {
    }
    %c1024_i32 = arith.constant 1024 : i32
    %3 = arith.muli %arg1, %c1024_i32 : i32
    %4 = tpu.assume_multiple %3, 1024 : i32
    %5 = arith.index_cast %4 : i32 to index
    %c0 = arith.constant 0 : index
    %6 = vector.load %arg3[%5, %c0] : memref<1024x128xbf16, #tpu.memory_space<vmem>>, vector<1024x128xbf16>
    %c0_1 = arith.constant 0 : index
    %c0_2 = arith.constant 0 : index
    %7 = vector.load %arg6[%c0_1, %c0_2] : memref<2x128xf32, #tpu.memory_space<vmem>>, vector<2x128xf32>
    %c0_3 = arith.constant 0 : index
    %c0_4 = arith.constant 0 : index
    %8 = vector.load %arg2[%c0_3, %c0_4] : memref<2x1024xf32, #tpu.memory_space<vmem>>, vector<2x1024xf32>
    %9 = arith.truncf %8 : vector<2x1024xf32> to vector<2x1024xbf16>
    %cst = arith.constant dense<0.000000e+00> : vector<2x128xf32>
    %10 = tpu.matmul %9, %6, %cst {dimension_numbers = #tpu.dot_dimension_numbers<[1], [0], [0], [1], [0, 0, 1, 1], [], []>} : vector<2x1024xbf16>, vector<1024x128xbf16>, vector<2x128xf32> -> vector<2x128xf32>
    %11 = arith.addf %7, %10 : vector<2x128xf32>
    %c0_5 = arith.constant 0 : index
    %c0_6 = arith.constant 0 : index
    %12 = vector.load %arg6[%c0_5, %c0_6] : memref<2x128xf32, #tpu.memory_space<vmem>>, vector<2x128xf32>
    tpu.vector_store %arg6[%c0_5, %c0_6], %11 {strides = array<i32>} : memref<2x128xf32, #tpu.memory_space<vmem>>, vector<2x128xf32>,
    %c0_i32_7 = arith.constant 0 : i32
    %13 = arith.cmpi eq, %arg1, %c0_i32_7 : i32
    %14 = arith.extui %13 : i1 to i32
    %c0_i32_8 = arith.constant 0 : i32
    %15 = arith.cmpi ne, %14, %c0_i32_8 : i32
    scf.if %15 {
      %c0_9 = arith.constant 0 : index
      %c0_10 = arith.constant 0 : index
      %16 = vector.load %arg4[%c0_9, %c0_10] : memref<2x128xf32, #tpu.memory_space<vmem>>, vector<1x128xf32>
      %c1 = arith.constant 1 : index
      %c0_11 = arith.constant 0 : index
      %17 = vector.load %arg4[%c1, %c0_11] : memref<2x128xf32, #tpu.memory_space<vmem>>, vector<1x128xf32>
      %c0_12 = arith.constant 0 : index
      %c0_13 = arith.constant 0 : index
      %18 = vector.load %arg6[%c0_12, %c0_13] : memref<2x128xf32, #tpu.memory_space<vmem>>, vector<2x128xf32>
      %19 = vector.broadcast %16 : vector<1x128xf32> to vector<2x128xf32>
      %20 = arith.addf %18, %19 : vector<2x128xf32>
      %cst_14 = arith.constant 0.000000e+00 : f32
      %21 = vector.broadcast %cst_14 : f32 to vector<2x128xf32>
      %22 = arith.cmpf ogt, %20, %21 : vector<2x128xf32>
      %cst_15 = arith.constant 2.000000e-01 : f32
      %23 = vector.broadcast %cst_15 : f32 to vector<2x128xf32>
      %24 = arith.mulf %23, %20 : vector<2x128xf32>
      %25 = arith.select %22, %20, %24 : vector<2x128xi1>, vector<2x128xf32>
      %26 = vector.broadcast %17 : vector<1x128xf32> to vector<2x128xf32>
      %27 = arith.mulf %25, %26 : vector<2x128xf32>
      %28 = vector.shape_cast %27 : vector<2x128xf32> to vector<1x2x128xf32>
      %cst_16 = arith.constant dense<0.000000e+00> : vector<1xf32>
      %29 = vector.multi_reduction <add>, %28, %cst_16 [1, 2] : vector<1x2x128xf32> to vector<1xf32>
      %30 = vector.shape_cast %29 : vector<1xf32> to vector<1x1x1xf32>
      %31 = vector.extract %30[0, 0, 0] : f32 from vector<1x1x1xf32>
      %cst_17 = arith.constant 5.000000e-01 : f32
      %32 = arith.mulf %31, %cst_17 : f32
      %c0_18 = arith.constant 0 : index
      %c0_19 = arith.constant 0 : index
      %33 = memref.load %arg5[%c0_18, %c0_19] : memref<1x1xf32, #tpu.memory_space<smem>>
      memref.store %32, %arg5[%c0_18, %c0_19] : memref<1x1xf32, #tpu.memory_space<smem>>
    } else {
    }
    return
  }
  func.func @transform_0(%arg0: i32, %arg1: i32) -> (i32, i32) {
    %c0_i32 = arith.constant 0 : i32
    return %arg0, %arg1 : i32, i32
  }
  func.func @transform_1(%arg0: i32, %arg1: i32) -> (i32, i32) {
    %c0_i32 = arith.constant 0 : i32
    %c0_i32_0 = arith.constant 0 : i32
    %c0_i32_1 = arith.constant 0 : i32
    return %c0_i32, %c0_i32_0 : i32, i32
  }
  func.func @transform_2(%arg0: i32, %arg1: i32) -> (i32, i32) {
    %c0_i32 = arith.constant 0 : i32
    %c0_i32_0 = arith.constant 0 : i32
    %c0_i32_1 = arith.constant 0 : i32
    return %c0_i32, %c0_i32_0 : i32, i32
  }
  func.func @transform_3(%arg0: i32, %arg1: i32) -> (i32, i32) {
    %c0_i32 = arith.constant 0 : i32
    %c0_i32_0 = arith.constant 0 : i32
    return %arg0, %c0_i32 : i32, i32
  }
}

</mosaic_0001>

<llo_original>
// kernel: wasserstein_gan_loss.1
$region0: #{wasserstein_gan_loss.1}
  #allocation0 [shape = 'u32[]', space=smem, size = 0x4, offset = 0x4, fixed_abs, tag = 'smem constant byte address 0x4 - core index']
  #allocation1 [shape = 'u32[144,128]{1,0:T(1,128)}', space=vmem, size = 0x12000, scoped, tag = 'internal scratch']
  #allocation2 [shape = 'f32[2,128]{1,0:T(2,128)}', space=vmem, size = 0x400, scoped, tag = 'scratch operand']
  %s0 = inlined_call_operand.vmem [shape: f32[2,1024], index: 0, kind: input, shape index: {}]
  %s1 = inlined_call_operand.vmem [shape: bf16[1024,128], index: 1, kind: input, shape index: {}]
  %s2 = inlined_call_operand.vmem [shape: f32[2,128], index: 2, kind: input, shape index: {}]
  %s3 = inlined_call_operand.hbm [shape: f32[1,1], index: 3, kind: output, shape index: {}]
  %s4 = sld [smem:[#allocation0]]
  $region30: #{wasserstein_gan_loss.1} parent=0
    _
  %s6 = ssub.s32 1, %s4
  %s7 = scalar_select 0, %s6, %s4
  $region1: #{wasserstein_gan_loss.1} parent=0
    #allocation3 [shape = 'u8[512]{0}', space=smem, size = 0x200, scoped, tag = 'output window, operand 0, single buffered']
    #allocation4 [shape = 's32[1]{0}', space=sflag, size = 0x4, scoped, tag = 'scoped memory for wasserstein_gan_loss.1']
    %8 = vsyncpa [#allocation4], 0
    // Predicated region
    $region2: #{wasserstein_gan_loss.1} parent=1 // pred_check
      _
    $region3: #{wasserstein_gan_loss.1} parent=1 // pred_check_branch
      %10 = sbr.rel (0) target = $region5
    $region4: #{wasserstein_gan_loss.1} parent=1 // pred_region
      _
    $region5: #{wasserstein_gan_loss.1} parent=1 // pred_fallthru
      _
    // Predicated region
    $region6: #{wasserstein_gan_loss.1} parent=1 // pred_check
      _
    $region7: #{wasserstein_gan_loss.1} parent=1 // pred_check_branch
      %12 = sbr.rel (0) target = $region9
    $region8: #{wasserstein_gan_loss.1} parent=1 // pred_region
      _
    $region9: #{wasserstein_gan_loss.1} parent=1 // pred_fallthru
      _
    // Predicated region
    $region10: #{wasserstein_gan_loss.1} parent=1 // pred_check
      _
    $region11: #{wasserstein_gan_loss.1} parent=1 // pred_check_branch
      %14 = sbr.rel (0) target = $region13
    $region12: #{wasserstein_gan_loss.1} parent=1 // pred_region
      _
    $region13: #{wasserstein_gan_loss.1} parent=1 // pred_fallthru
      _
    %p16 = scmp.eq.s32.totalorder 0, 0
    // Predicated region
    $region14: #{wasserstein_gan_loss.1} parent=1 // pred_check
      %p17 = pneg %p16
    $region15: #{wasserstein_gan_loss.1} parent=1 // pred_check_branch
      %19 = sbr.rel (%p17) target = $region17
    $region16: #{wasserstein_gan_loss.1} parent=1 // pred_region
      %20 = vst [vmem:[#allocation2] sm:$0x3] 0.0
    $region17: #{wasserstein_gan_loss.1} parent=1 // pred_fallthru
      _
    %s21 = smul.u32 0, 1024
    %s22 = sshra.s32 %s21, 3
    %s23 = sand.u32 %s21, 7
    %s24 = smul.addr %s22, 4
    %s25 = scalar_lea.vmem %s1, %s24
    %v26 = vld [vmem:[%s25] sm:$0xf]
    %v27 = vld [vmem:[%s25 + $0x4] sm:$0xf]
    %v28 = vld [vmem:[%s25 + $0x8] sm:$0xf]
    %v29 = vld [vmem:[%s25 + $0xc] sm:$0xf]
    %v30 = vld [vmem:[%s25 + $0x10] sm:$0xf]
    %v31 = vld [vmem:[%s25 + $0x14] sm:$0xf]
    %v32 = vld [vmem:[%s25 + $0x18] sm:$0xf]
    %v33 = vld [vmem:[%s25 + $0x1c] sm:$0xf]
    %v34 = vld [vmem:[%s25 + $0x20] sm:$0xf]
    %v35 = vld [vmem:[%s25 + $0x24] sm:$0xf]
    %v36 = vld [vmem:[%s25 + $0x28] sm:$0xf]
    %v37 = vld [vmem:[%s25 + $0x2c] sm:$0xf]
    %v38 = vld [vmem:[%s25 + $0x30] sm:$0xf]
    %v39 = vld [vmem:[%s25 + $0x34] sm:$0xf]
    %v40 = vld [vmem:[%s25 + $0x38] sm:$0xf]
    %v41 = vld [vmem:[%s25 + $0x3c] sm:$0xf]
    %v42 = vld [vmem:[%s25 + $0x40] sm:$0xf]
    %v43 = vld [vmem:[%s25 + $0x44] sm:$0xf]
    %v44 = vld [vmem:[%s25 + $0x48] sm:$0xf]
    %v45 = vld [vmem:[%s25 + $0x4c] sm:$0xf]
    %v46 = vld [vmem:[%s25 + $0x50] sm:$0xf]
    %v47 = vld [vmem:[%s25 + $0x54] sm:$0xf]
    %v48 = vld [vmem:[%s25 + $0x58] sm:$0xf]
    %v49 = vld [vmem:[%s25 + $0x5c] sm:$0xf]
    %v50 = vld [vmem:[%s25 + $0x60] sm:$0xf]
    %v51 = vld [vmem:[%s25 + $0x64] sm:$0xf]
    %v52 = vld [vmem:[%s25 + $0x68] sm:$0xf]
    %v53 = vld [vmem:[%s25 + $0x6c] sm:$0xf]
    %v54 = vld [vmem:[%s25 + $0x70] sm:$0xf]
    %v55 = vld [vmem:[%s25 + $0x74] sm:$0xf]
    %v56 = vld [vmem:[%s25 + $0x78] sm:$0xf]
    %v57 = vld [vmem:[%s25 + $0x7c] sm:$0xf]
    %v58 = vld [vmem:[%s25 + $0x80] sm:$0xf]
    %v59 = vld [vmem:[%s25 + $0x84] sm:$0xf]
    %v60 = vld [vmem:[%s25 + $0x88] sm:$0xf]
    %v61 = vld [vmem:[%s25 + $0x8c] sm:$0xf]
    %v62 = vld [vmem:[%s25 + $0x90] sm:$0xf]
    %v63 = vld [vmem:[%s25 + $0x94] sm:$0xf]
    %v64 = vld [vmem:[%s25 + $0x98] sm:$0xf]
    %v65 = vld [vmem:[%s25 + $0x9c] sm:$0xf]
    %v66 = vld [vmem:[%s25 + $0xa0] sm:$0xf]
    %v67 = vld [vmem:[%s25 + $0xa4] sm:$0xf]
    %v68 = vld [vmem:[%s25 + $0xa8] sm:$0xf]
    %v69 = vld [vmem:[%s25 + $0xac] sm:$0xf]
    %v70 = vld [vmem:[%s25 + $0xb0] sm:$0xf]
    %v71 = vld [vmem:[%s25 + $0xb4] sm:$0xf]
    %v72 = vld [vmem:[%s25 + $0xb8] sm:$0xf]
    %v73 = vld [vmem:[%s25 + $0xbc] sm:$0xf]
    %v74 = vld [vmem:[%s25 + $0xc0] sm:$0xf]
    %v75 = vld [vmem:[%s25 + $0xc4] sm:$0xf]
    %v76 = vld [vmem:[%s25 + $0xc8] sm:$0xf]
    %v77 = vld [vmem:[%s25 + $0xcc] sm:$0xf]
    %v78 = vld [vmem:[%s25 + $0xd0] sm:$0xf]
    %v79 = vld [vmem:[%s25 + $0xd4] sm:$0xf]
    %v80 = vld [vmem:[%s25 + $0xd8] sm:$0xf]
    %v81 = vld [vmem:[%s25 + $0xdc] sm:$0xf]
    %v82 = vld [vmem:[%s25 + $0xe0] sm:$0xf]
    %v83 = vld [vmem:[%s25 + $0xe4] sm:$0xf]
    %v84 = vld [vmem:[%s25 + $0xe8] sm:$0xf]
    %v85 = vld [vmem:[%s25 + $0xec] sm:$0xf]
    %v86 = vld [vmem:[%s25 + $0xf0] sm:$0xf]
    %v87 = vld [vmem:[%s25 + $0xf4] sm:$0xf]
    %v88 = vld [vmem:[%s25 + $0xf8] sm:$0xf]
    %v89 = vld [vmem:[%s25 + $0xfc] sm:$0xf]
    %v90 = vld [vmem:[%s25 + $0x100] sm:$0xf]
    %v91 = vld [vmem:[%s25 + $0x104] sm:$0xf]
    %v92 = vld [vmem:[%s25 + $0x108] sm:$0xf]
    %v93 = vld [vmem:[%s25 + $0x10c] sm:$0xf]
    %v94 = vld [vmem:[%s25 + $0x110] sm:$0xf]
    %v95 = vld [vmem:[%s25 + $0x114] sm:$0xf]
    %v96 = vld [vmem:[%s25 + $0x118] sm:$0xf]
    %v97 = vld [vmem:[%s25 + $0x11c] sm:$0xf]
    %v98 = vld [vmem:[%s25 + $0x120] sm:$0xf]
    %v99 = vld [vmem:[%s25 + $0x124] sm:$0xf]
    %v100 = vld [vmem:[%s25 + $0x128] sm:$0xf]
    %v101 = vld [vmem:[%s25 + $0x12c] sm:$0xf]
    %v102 = vld [vmem:[%s25 + $0x130] sm:$0xf]
    %v103 = vld [vmem:[%s25 + $0x134] sm:$0xf]
    %v104 = vld [vmem:[%s25 + $0x138] sm:$0xf]
    %v105 = vld [vmem:[%s25 + $0x13c] sm:$0xf]
    %v106 = vld [vmem:[%s25 + $0x140] sm:$0xf]
    %v107 = vld [vmem:[%s25 + $0x144] sm:$0xf]
    %v108 = vld [vmem:[%s25 + $0x148] sm:$0xf]
    %v109 = vld [vmem:[%s25 + $0x14c] sm:$0xf]
    %v110 = vld [vmem:[%s25 + $0x150] sm:$0xf]
    %v111 = vld [vmem:[%s25 + $0x154] sm:$0xf]
    %v112 = vld [vmem:[%s25 + $0x158] sm:$0xf]
    %v113 = vld [vmem:[%s25 + $0x15c] sm:$0xf]
    %v114 = vld [vmem:[%s25 + $0x160] sm:$0xf]
    %v115 = vld [vmem:[%s25 + $0x164] sm:$0xf]
    %v116 = vld [vmem:[%s25 + $0x168] sm:$0xf]
    %v117 = vld [vmem:[%s25 + $0x16c] sm:$0xf]
    %v118 = vld [vmem:[%s25 + $0x170] sm:$0xf]
    %v119 = vld [vmem:[%s25 + $0x174] sm:$0xf]
    %v120 = vld [vmem:[%s25 + $0x178] sm:$0xf]
    %v121 = vld [vmem:[%s25 + $0x17c] sm:$0xf]
    %v122 = vld [vmem:[%s25 + $0x180] sm:$0xf]
    %v123 = vld [vmem:[%s25 + $0x184] sm:$0xf]
    %v124 = vld [vmem:[%s25 + $0x188] sm:$0xf]
    %v125 = vld [vmem:[%s25 + $0x18c] sm:$0xf]
    %v126 = vld [vmem:[%s25 + $0x190] sm:$0xf]
    %v127 = vld [vmem:[%s25 + $0x194] sm:$0xf]
    %v128 = vld [vmem:[%s25 + $0x198] sm:$0xf]
    %v129 = vld [vmem:[%s25 + $0x19c] sm:$0xf]
    %v130 = vld [vmem:[%s25 + $0x1a0] sm:$0xf]
    %v131 = vld [vmem:[%s25 + $0x1a4] sm:$0xf]
    %v132 = vld [vmem:[%s25 + $0x1a8] sm:$0xf]
    %v133 = vld [vmem:[%s25 + $0x1ac] sm:$0xf]
    %v134 = vld [vmem:[%s25 + $0x1b0] sm:$0xf]
    %v135 = vld [vmem:[%s25 + $0x1b4] sm:$0xf]
    %v136 = vld [vmem:[%s25 + $0x1b8] sm:$0xf]
    %v137 = vld [vmem:[%s25 + $0x1bc] sm:$0xf]
    %v138 = vld [vmem:[%s25 + $0x1c0] sm:$0xf]
    %v139 = vld [vmem:[%s25 + $0x1c4] sm:$0xf]
    %v140 = vld [vmem:[%s25 + $0x1c8] sm:$0xf]
    %v141 = vld [vmem:[%s25 + $0x1cc] sm:$0xf]
    %v142 = vld [vmem:[%s25 + $0x1d0] sm:$0xf]
    %v143 = vld [vmem:[%s25 + $0x1d4] sm:$0xf]
    %v144 = vld [vmem:[%s25 + $0x1d8] sm:$0xf]
    %v145 = vld [vmem:[%s25 + $0x1dc] sm:$0xf]
    %v146 = vld [vmem:[%s25 + $0x1e0] sm:$0xf]
    %v147 = vld [vmem:[%s25 + $0x1e4] sm:$0xf]
    %v148 = vld [vmem:[%s25 + $0x1e8] sm:$0xf]
    %v149 = vld [vmem:[%s25 + $0x1ec] sm:$0xf]
    %v150 = vld [vmem:[%s25 + $0x1f0] sm:$0xf]
    %v151 = vld [vmem:[%s25 + $0x1f4] sm:$0xf]
    %v152 = vld [vmem:[%s25 + $0x1f8] sm:$0xf]
    %v153 = vld [vmem:[%s25 + $0x1fc] sm:$0xf]
    %v154 = vld [vmem:[#allocation2] sm:$0x3]
    %v155 = vld [vmem:[%s0] sm:$0xff]
    %v156 = vld [vmem:[%s0 + $0x8] sm:$0xff]
    %v159 = vcombine.high %v155, %v155
    %v161 = vunpack.c.l.s4 1983009808
    %v162 = vunpack.c.0.s8 %v161
    %v163 = vlaneseq
    %v164 = vshrl.u32 %v163, 7
    %v165 = vsub.s32 %v162, %v164
    %v166 = vrot.slane %v155, %v165
    %v168 = vunpack.c.l.s4 1983009808
    %v169 = vunpack.c.0.s8 %v168
    %v170 = vlaneseq
    %v171 = vshrl.u32 %v170, 7
    %v172 = vsub.s32 %v169, %v171
    %v173 = vrot.slane %v159, %v172
    %v174 = vcombine.high %v166, %v166
    %v175 = vcombine.high %v173, %v173
    %v176 = vcombine.high %v156, %v156
    %v178 = vunpack.c.l.s4 1983009808
    %v179 = vunpack.c.0.s8 %v178
    %v180 = vlaneseq
    %v181 = vshrl.u32 %v180, 7
    %v182 = vsub.s32 %v179, %v181
    %v183 = vrot.slane %v156, %v182
    %v185 = vunpack.c.l.s4 1983009808
    %v186 = vunpack.c.0.s8 %v185
    %v187 = vlaneseq
    %v188 = vshrl.u32 %v187, 7
    %v189 = vsub.s32 %v186, %v188
    %v190 = vrot.slane %v176, %v189
    %v191 = vcombine.high %v183, %v183
    %v192 = vcombine.high %v190, %v190
    %v201 = vpack.c.bf16 %v166, %v166
    %v202 = vpack.c.bf16 %v174, %v174
    %v203 = vpack.c.bf16 %v173, %v173
    %v204 = vpack.c.bf16 %v175, %v175
    %v205 = vpack.c.bf16 %v183, %v183
    %v206 = vpack.c.bf16 %v191, %v191
    %v207 = vpack.c.bf16 %v190, %v190
    %v208 = vpack.c.bf16 %v192, %v192
    %v337 = vunpack.c.l.b16 %v26
    %v338 = vunpack.c.l.b16 %v27
    %v339 = vunpack.c.l.b16 %v28
    %v340 = vunpack.c.l.b16 %v29
    %v341 = vunpack.c.l.b16 %v30
    %v342 = vunpack.c.l.b16 %v31
    %v343 = vunpack.c.l.b16 %v32
    %v344 = vunpack.c.l.b16 %v33
    %v345 = vunpack.c.l.b16 %v34
    %v346 = vunpack.c.l.b16 %v35
    %v347 = vunpack.c.l.b16 %v36
    %v348 = vunpack.c.l.b16 %v37
    %v349 = vunpack.c.l.b16 %v38
    %v350 = vunpack.c.l.b16 %v39
    %v351 = vunpack.c.l.b16 %v40
    %v352 = vunpack.c.l.b16 %v41
    %v353 = vunpack.c.l.b16 %v42
    %v354 = vunpack.c.l.b16 %v43
    %v355 = vunpack.c.l.b16 %v44
    %v356 = vunpack.c.l.b16 %v45
    %v357 = vunpack.c.l.b16 %v46
    %v358 = vunpack.c.l.b16 %v47
    %v359 = vunpack.c.l.b16 %v48
    %v360 = vunpack.c.l.b16 %v49
    %v361 = vunpack.c.l.b16 %v50
    %v362 = vunpack.c.l.b16 %v51
    %v363 = vunpack.c.l.b16 %v52
    %v364 = vunpack.c.l.b16 %v53
    %v365 = vunpack.c.l.b16 %v54
    %v366 = vunpack.c.l.b16 %v55
    %v367 = vunpack.c.l.b16 %v56
    %v368 = vunpack.c.l.b16 %v57
    %v369 = vunpack.c.l.b16 %v58
    %v370 = vunpack.c.l.b16 %v59
    %v371 = vunpack.c.l.b16 %v60
    %v372 = vunpack.c.l.b16 %v61
    %v373 = vunpack.c.l.b16 %v62
    %v374 = vunpack.c.l.b16 %v63
    %v375 = vunpack.c.l.b16 %v64
    %v376 = vunpack.c.l.b16 %v65
    %v377 = vunpack.c.l.b16 %v66
    %v378 = vunpack.c.l.b16 %v67
    %v379 = vunpack.c.l.b16 %v68
    %v380 = vunpack.c.l.b16 %v69
    %v381 = vunpack.c.l.b16 %v70
    %v382 = vunpack.c.l.b16 %v71
    %v383 = vunpack.c.l.b16 %v72
    %v384 = vunpack.c.l.b16 %v73
    %v385 = vunpack.c.l.b16 %v74
    %v386 = vunpack.c.l.b16 %v75
    %v387 = vunpack.c.l.b16 %v76
    %v388 = vunpack.c.l.b16 %v77
    %v389 = vunpack.c.l.b16 %v78
    %v390 = vunpack.c.l.b16 %v79
    %v391 = vunpack.c.l.b16 %v80
    %v392 = vunpack.c.l.b16 %v81
    %v393 = vunpack.c.l.b16 %v82
    %v394 = vunpack.c.l.b16 %v83
    %v395 = vunpack.c.l.b16 %v84
    %v396 = vunpack.c.l.b16 %v85
    %v397 = vunpack.c.l.b16 %v86
    %v398 = vunpack.c.l.b16 %v87
    %v399 = vunpack.c.l.b16 %v88
    %v400 = vunpack.c.l.b16 %v89
    %v401 = vunpack.c.l.b16 %v90
    %v402 = vunpack.c.l.b16 %v91
    %v403 = vunpack.c.l.b16 %v92
    %v404 = vunpack.c.l.b16 %v93
    %v405 = vunpack.c.l.b16 %v94
    %v406 = vunpack.c.l.b16 %v95
    %v407 = vunpack.c.l.b16 %v96
    %v408 = vunpack.c.l.b16 %v97
    %v409 = vunpack.c.l.b16 %v98
    %v410 = vunpack.c.l.b16 %v99
    %v411 = vunpack.c.l.b16 %v100
    %v412 = vunpack.c.l.b16 %v101
    %v413 = vunpack.c.l.b16 %v102
    %v414 = vunpack.c.l.b16 %v103
    %v415 = vunpack.c.l.b16 %v104
    %v416 = vunpack.c.l.b16 %v105
    %v417 = vunpack.c.l.b16 %v106
    %v418 = vunpack.c.l.b16 %v107
    %v419 = vunpack.c.l.b16 %v108
    %v420 = vunpack.c.l.b16 %v109
    %v421 = vunpack.c.l.b16 %v110
    %v422 = vunpack.c.l.b16 %v111
    %v423 = vunpack.c.l.b16 %v112
    %v424 = vunpack.c.l.b16 %v113
    %v425 = vunpack.c.l.b16 %v114
    %v426 = vunpack.c.l.b16 %v115
    %v427 = vunpack.c.l.b16 %v116
    %v428 = vunpack.c.l.b16 %v117
    %v429 = vunpack.c.l.b16 %v118
    %v430 = vunpack.c.l.b16 %v119
    %v431 = vunpack.c.l.b16 %v120
    %v432 = vunpack.c.l.b16 %v121
    %v433 = vunpack.c.l.b16 %v122
    %v434 = vunpack.c.l.b16 %v123
    %v435 = vunpack.c.l.b16 %v124
    %v436 = vunpack.c.l.b16 %v125
    %v437 = vunpack.c.l.b16 %v126
    %v438 = vunpack.c.l.b16 %v127
    %v439 = vunpack.c.l.b16 %v128
    %v440 = vunpack.c.l.b16 %v129
    %v441 = vunpack.c.l.b16 %v130
    %v442 = vunpack.c.l.b16 %v131
    %v443 = vunpack.c.l.b16 %v132
    %v444 = vunpack.c.l.b16 %v133
    %v445 = vunpack.c.l.b16 %v134
    %v446 = vunpack.c.l.b16 %v135
    %v447 = vunpack.c.l.b16 %v136
    %v448 = vunpack.c.l.b16 %v137
    %v449 = vunpack.c.l.b16 %v138
    %v450 = vunpack.c.l.b16 %v139
    %v451 = vunpack.c.l.b16 %v140
    %v452 = vunpack.c.l.b16 %v141
    %v453 = vunpack.c.l.b16 %v142
    %v454 = vunpack.c.l.b16 %v143
    %v455 = vunpack.c.l.b16 %v144
    %v456 = vunpack.c.l.b16 %v145
    %v457 = vunpack.c.l.b16 %v146
    %v458 = vunpack.c.l.b16 %v147
    %v459 = vunpack.c.l.b16 %v148
    %v460 = vunpack.c.l.b16 %v149
    %v461 = vunpack.c.l.b16 %v150
    %v462 = vunpack.c.l.b16 %v151
    %v463 = vunpack.c.l.b16 %v152
    %v464 = vunpack.c.l.b16 %v153
    %v465 = vpack.c.b16 %v338, %v337
    %v466 = vpack.c.b16 %v340, %v339
    %v467 = vpack.c.b16 %v342, %v341
    %v468 = vpack.c.b16 %v344, %v343
    %v469 = vpack.c.b16 %v346, %v345
    %v470 = vpack.c.b16 %v348, %v347
    %v471 = vpack.c.b16 %v350, %v349
    %v472 = vpack.c.b16 %v352, %v351
    %v473 = vpack.c.b16 %v354, %v353
    %v474 = vpack.c.b16 %v356, %v355
    %v475 = vpack.c.b16 %v358, %v357
    %v476 = vpack.c.b16 %v360, %v359
    %v477 = vpack.c.b16 %v362, %v361
    %v478 = vpack.c.b16 %v364, %v363
    %v479 = vpack.c.b16 %v366, %v365
    %v480 = vpack.c.b16 %v368, %v367
    %v481 = vpack.c.b16 %v370, %v369
    %v482 = vpack.c.b16 %v372, %v371
    %v483 = vpack.c.b16 %v374, %v373
    %v484 = vpack.c.b16 %v376, %v375
    %v485 = vpack.c.b16 %v378, %v377
    %v486 = vpack.c.b16 %v380, %v379
    %v487 = vpack.c.b16 %v382, %v381
    %v488 = vpack.c.b16 %v384, %v383
    %v489 = vpack.c.b16 %v386, %v385
    %v490 = vpack.c.b16 %v388, %v387
    %v491 = vpack.c.b16 %v390, %v389
    %v492 = vpack.c.b16 %v392, %v391
    %v493 = vpack.c.b16 %v394, %v393
    %v494 = vpack.c.b16 %v396, %v395
    %v495 = vpack.c.b16 %v398, %v397
    %v496 = vpack.c.b16 %v400, %v399
    %v497 = vpack.c.b16 %v402, %v401
    %v498 = vpack.c.b16 %v404, %v403
    %v499 = vpack.c.b16 %v406, %v405
    %v500 = vpack.c.b16 %v408, %v407
    %v501 = vpack.c.b16 %v410, %v409
    %v502 = vpack.c.b16 %v412, %v411
    %v503 = vpack.c.b16 %v414, %v413
    %v504 = vpack.c.b16 %v416, %v415
    %v505 = vpack.c.b16 %v418, %v417
    %v506 = vpack.c.b16 %v420, %v419
    %v507 = vpack.c.b16 %v422, %v421
    %v508 = vpack.c.b16 %v424, %v423
    %v509 = vpack.c.b16 %v426, %v425
    %v510 = vpack.c.b16 %v428, %v427
    %v511 = vpack.c.b16 %v430, %v429
    %v512 = vpack.c.b16 %v432, %v431
    %v513 = vpack.c.b16 %v434, %v433
    %v514 = vpack.c.b16 %v436, %v435
    %v515 = vpack.c.b16 %v438, %v437
    %v516 = vpack.c.b16 %v440, %v439
    %v517 = vpack.c.b16 %v442, %v441
    %v518 = vpack.c.b16 %v444, %v443
    %v519 = vpack.c.b16 %v446, %v445
    %v520 = vpack.c.b16 %v448, %v447
    %v521 = vpack.c.b16 %v450, %v449
    %v522 = vpack.c.b16 %v452, %v451
    %v523 = vpack.c.b16 %v454, %v453
    %v524 = vpack.c.b16 %v456, %v455
    %v525 = vpack.c.b16 %v458, %v457
    %v526 = vpack.c.b16 %v460, %v459
    %v527 = vpack.c.b16 %v462, %v461
    %v528 = vpack.c.b16 %v464, %v463
    %593 = vmatprep.subr.bf16.mxu0 0
    %594 = vmatpush1.bf16.msra.mxu0 %v465
    %595 = vmatprep.subr.bf16.mxu0 0
    %596 = vmatpush1.bf16.msra.mxu0 %v466
    %597 = vmatprep.subr.bf16.mxu0 0
    %598 = vmatpush1.bf16.msra.mxu0 %v467
    %599 = vmatprep.subr.bf16.mxu0 0
    %600 = vmatpush1.bf16.msra.mxu0 %v468
    %601 = vmatprep.subr.bf16.mxu0 0
    %602 = vmatpush1.bf16.msra.mxu0 %v469
    %603 = vmatprep.subr.bf16.mxu0 0
    %604 = vmatpush1.bf16.msra.mxu0 %v470
    %605 = vmatprep.subr.bf16.mxu0 0
    %606 = vmatpush1.bf16.msra.mxu0 %v471
    %607 = vmatprep.subr.bf16.mxu0 0
    %608 = vmatpush1.bf16.msra.mxu0 %v472
    %609 = vmatprep.subr.bf16.mxu0 0
    %610 = vmatpush1.bf16.msra.mxu0 %v473
    %611 = vmatprep.subr.bf16.mxu0 0
    %612 = vmatpush1.bf16.msra.mxu0 %v474
    %613 = vmatprep.subr.bf16.mxu0 0
    %614 = vmatpush1.bf16.msra.mxu0 %v475
    %615 = vmatprep.subr.bf16.mxu0 0
    %616 = vmatpush1.bf16.msra.mxu0 %v476
    %617 = vmatprep.subr.bf16.mxu0 0
    %618 = vmatpush1.bf16.msra.mxu0 %v477
    %619 = vmatprep.subr.bf16.mxu0 0
    %620 = vmatpush1.bf16.msra.mxu0 %v478
    %621 = vmatprep.subr.bf16.mxu0 0
    %622 = vmatpush1.bf16.msra.mxu0 %v479
    %623 = vmatprep.subr.bf16.mxu0 0
    %624 = vmatpush1.bf16.msra.mxu0 %v480
    %625 = vmatprep.mubr.bf16.mxu0 %v202
    %626 = vmatmul.mubr.bf16.gmra.mrb[0].mxu0 %v201
    %v627 = vpop.f32.mrb[0].mxu0
    %v628 = vadd.f32 0.0, %v627
    %v629 = vpop.f32.mrb[0].mxu0
    %v630 = vpop.f32.mrb[0].mxu0
    %v631 = vpop.f32.mrb[0].mxu0
    %632 = vdwg.mxu0
    %633 = vmatprep.subr.bf16.mxu0 0
    %634 = vmatpush1.bf16.msra.mxu0 %v481
    %635 = vmatprep.subr.bf16.mxu0 0
    %636 = vmatpush1.bf16.msra.mxu0 %v482
    %637 = vmatprep.subr.bf16.mxu0 0
    %638 = vmatpush1.bf16.msra.mxu0 %v483
    %639 = vmatprep.subr.bf16.mxu0 0
    %640 = vmatpush1.bf16.msra.mxu0 %v484
    %641 = vmatprep.subr.bf16.mxu0 0
    %642 = vmatpush1.bf16.msra.mxu0 %v485
    %643 = vmatprep.subr.bf16.mxu0 0
    %644 = vmatpush1.bf16.msra.mxu0 %v486
    %645 = vmatprep.subr.bf16.mxu0 0
    %646 = vmatpush1.bf16.msra.mxu0 %v487
    %647 = vmatprep.subr.bf16.mxu0 0
    %648 = vmatpush1.bf16.msra.mxu0 %v488
    %649 = vmatprep.subr.bf16.mxu0 0
    %650 = vmatpush1.bf16.msra.mxu0 %v489
    %651 = vmatprep.subr.bf16.mxu0 0
    %652 = vmatpush1.bf16.msra.mxu0 %v490
    %653 = vmatprep.subr.bf16.mxu0 0
    %654 = vmatpush1.bf16.msra.mxu0 %v491
    %655 = vmatprep.subr.bf16.mxu0 0
    %656 = vmatpush1.bf16.msra.mxu0 %v492
    %657 = vmatprep.subr.bf16.mxu0 0
    %658 = vmatpush1.bf16.msra.mxu0 %v493
    %659 = vmatprep.subr.bf16.mxu0 0
    %660 = vmatpush1.bf16.msra.mxu0 %v494
    %661 = vmatprep.subr.bf16.mxu0 0
    %662 = vmatpush1.bf16.msra.mxu0 %v495
    %663 = vmatprep.subr.bf16.mxu0 0
    %664 = vmatpush1.bf16.msra.mxu0 %v496
    %665 = vmatprep.mubr.bf16.mxu0 %v204
    %666 = vmatmul.mubr.bf16.gmra.mrb[0].mxu0 %v203
    %v667 = vpop.f32.mrb[0].mxu0
    %v668 = vadd.f32 %v628, %v667
    %v669 = vpop.f32.mrb[0].mxu0
    %v670 = vpop.f32.mrb[0].mxu0
    %v671 = vpop.f32.mrb[0].mxu0
    %672 = vdwg.mxu0
    %673 = vmatprep.subr.bf16.mxu0 0
    %674 = vmatpush1.bf16.msra.mxu0 %v497
    %675 = vmatprep.subr.bf16.mxu0 0
    %676 = vmatpush1.bf16.msra.mxu0 %v498
    %677 = vmatprep.subr.bf16.mxu0 0
    %678 = vmatpush1.bf16.msra.mxu0 %v499
    %679 = vmatprep.subr.bf16.mxu0 0
    %680 = vmatpush1.bf16.msra.mxu0 %v500
    %681 = vmatprep.subr.bf16.mxu0 0
    %682 = vmatpush1.bf16.msra.mxu0 %v501
    %683 = vmatprep.subr.bf16.mxu0 0
    %684 = vmatpush1.bf16.msra.mxu0 %v502
    %685 = vmatprep.subr.bf16.mxu0 0
    %686 = vmatpush1.bf16.msra.mxu0 %v503
    %687 = vmatprep.subr.bf16.mxu0 0
    %688 = vmatpush1.bf16.msra.mxu0 %v504
    %689 = vmatprep.subr.bf16.mxu0 0
    %690 = vmatpush1.bf16.msra.mxu0 %v505
    %691 = vmatprep.subr.bf16.mxu0 0
    %692 = vmatpush1.bf16.msra.mxu0 %v506
    %693 = vmatprep.subr.bf16.mxu0 0
    %694 = vmatpush1.bf16.msra.mxu0 %v507
    %695 = vmatprep.subr.bf16.mxu0 0
    %696 = vmatpush1.bf16.msra.mxu0 %v508
    %697 = vmatprep.subr.bf16.mxu0 0
    %698 = vmatpush1.bf16.msra.mxu0 %v509
    %699 = vmatprep.subr.bf16.mxu0 0
    %700 = vmatpush1.bf16.msra.mxu0 %v510
    %701 = vmatprep.subr.bf16.mxu0 0
    %702 = vmatpush1.bf16.msra.mxu0 %v511
    %703 = vmatprep.subr.bf16.mxu0 0
    %704 = vmatpush1.bf16.msra.mxu0 %v512
    %705 = vmatprep.mubr.bf16.mxu0 %v206
    %706 = vmatmul.mubr.bf16.gmra.mrb[0].mxu0 %v205
    %v707 = vpop.f32.mrb[0].mxu0
    %v708 = vadd.f32 %v668, %v707
    %v709 = vpop.f32.mrb[0].mxu0
    %v710 = vpop.f32.mrb[0].mxu0
    %v711 = vpop.f32.mrb[0].mxu0
    %712 = vdwg.mxu0
    %713 = vmatprep.subr.bf16.mxu0 0
    %714 = vmatpush1.bf16.msra.mxu0 %v513
    %715 = vmatprep.subr.bf16.mxu0 0
    %716 = vmatpush1.bf16.msra.mxu0 %v514
    %717 = vmatprep.subr.bf16.mxu0 0
    %718 = vmatpush1.bf16.msra.mxu0 %v515
    %719 = vmatprep.subr.bf16.mxu0 0
    %720 = vmatpush1.bf16.msra.mxu0 %v516
    %721 = vmatprep.subr.bf16.mxu0 0
    %722 = vmatpush1.bf16.msra.mxu0 %v517
    %723 = vmatprep.subr.bf16.mxu0 0
    %724 = vmatpush1.bf16.msra.mxu0 %v518
    %725 = vmatprep.subr.bf16.mxu0 0
    %726 = vmatpush1.bf16.msra.mxu0 %v519
    %727 = vmatprep.subr.bf16.mxu0 0
    %728 = vmatpush1.bf16.msra.mxu0 %v520
    %729 = vmatprep.subr.bf16.mxu0 0
    %730 = vmatpush1.bf16.msra.mxu0 %v521
    %731 = vmatprep.subr.bf16.mxu0 0
    %732 = vmatpush1.bf16.msra.mxu0 %v522
    %733 = vmatprep.subr.bf16.mxu0 0
    %734 = vmatpush1.bf16.msra.mxu0 %v523
    %735 = vmatprep.subr.bf16.mxu0 0
    %736 = vmatpush1.bf16.msra.mxu0 %v524
    %737 = vmatprep.subr.bf16.mxu0 0
    %738 = vmatpush1.bf16.msra.mxu0 %v525
    %739 = vmatprep.subr.bf16.mxu0 0
    %740 = vmatpush1.bf16.msra.mxu0 %v526
    %741 = vmatprep.subr.bf16.mxu0 0
    %742 = vmatpush1.bf16.msra.mxu0 %v527
    %743 = vmatprep.subr.bf16.mxu0 0
    %744 = vmatpush1.bf16.msra.mxu0 %v528
    %745 = vmatprep.mubr.bf16.mxu0 %v208
    %746 = vmatmul.mubr.bf16.gmra.mrb[0].mxu0 %v207
    %v747 = vpop.f32.mrb[0].mxu0
    %v748 = vadd.f32 %v708, %v747
    %v749 = vpop.f32.mrb[0].mxu0
    %v750 = vpop.f32.mrb[0].mxu0
    %v751 = vpop.f32.mrb[0].mxu0
    %752 = vdwg.mxu0
    %v753 = vadd.f32 %v154, %v748
    %754 = vst [vmem:[#allocation2] sm:$0x3] %v753
    // Predicated region
    $region18: #{wasserstein_gan_loss.1} parent=1 // pred_check
      %p755 = pneg %p16
    $region19: #{wasserstein_gan_loss.1} parent=1 // pred_check_branch
      %757 = sbr.rel (%p755) target = $region21
    $region20: #{wasserstein_gan_loss.1} parent=1 // pred_region
      %v758 = vld [vmem:[%s2] sm:$0x1]
      %v759 = vld [vmem:[%s2 + $0x1] sm:$0x1]
      %v760 = vld [vmem:[#allocation2] sm:$0x3]
      %v761 = vlaneseq
      %v762 = vshrl.u32 %v761, 7
      %v763 = vsub.s32 0, %v762
      %v764 = vrot.slane %v758, %v763
      %v765 = vadd.f32 %v760, %v764
      %vm766 = vcmp.gt.f32.partialorder %v765, 0.0
      %v767 = vmul.f32 %v765, 0.2
      %v768 = vsel %vm766, %v765, %v767
      %v769 = vlaneseq
      %v770 = vshrl.u32 %v769, 7
      %v771 = vsub.s32 0, %v770
      %v772 = vrot.slane %v759, %v771
      %v773 = vmul.f32 %v768, %v772
      %vm774 = vcmask 1041408
      %v775 = vsel %vm774, %v773, 0.0
      %776 = vadd.xlane.f32.xlu0 %v775
      %v777 = vpop.xlane.xlu0 %776
      %v778 = vrot.slane %v777, 4
      %v779 = vadd.f32 %v777, %v778
      %v780 = vrot.slane %v779, 2
      %v781 = vadd.f32 %v779, %v780
      %v782 = vrot.slane %v781, 1
      %v783 = vadd.f32 %v781, %v782
      %s784 = vtos %v783
      %s785 = smul.f32 %s784, 0.5
      %s786 = scalar_lea.smem [#allocation3], 0
      %787 = sst [smem:[%s786]] %s785
    $region21: #{wasserstein_gan_loss.1} parent=1 // pred_fallthru
      _
    // Predicated region
    $region22: #{wasserstein_gan_loss.1} parent=1 // pred_check
      _
    $region23: #{wasserstein_gan_loss.1} parent=1 // pred_check_branch
      %789 = sbr.rel (0) target = $region25
    $region24: #{wasserstein_gan_loss.1} parent=1 // pred_region
      %s791 = ssub.s32 16, 16
      %792 = vsyncadd [#allocation4], %s791
      %795 = dma.smem_to_hbm [#allocation3], 16, %s3, [#allocation4]
    $region25: #{wasserstein_gan_loss.1} parent=1 // pred_fallthru
      _
    // Predicated region
    $region26: #{wasserstein_gan_loss.1} parent=1 // pred_check
      _
    $region27: #{wasserstein_gan_loss.1} parent=1 // pred_check_branch
      %797 = sbr.rel (0) target = $region29
    $region28: #{wasserstein_gan_loss.1} parent=1 // pred_region
      %798 = dma.done [#allocation4], 16
    $region29: #{wasserstein_gan_loss.1} parent=1 // pred_fallthru
      _
    %799 = sfence
    %800 = vsyncpa [#allocation4], 1

</llo_original>
